<compile_context>
chip_gen: v6e
topology: v6e:2x2x1
jax: 0.10.0
libtpu: 0.0.40
codegen_flags: <defaults>
</compile_context>

<pallas_src>
import math
import functools

import jax
import jax.numpy as jnp
from jax.experimental import pallas as pl
from jax.experimental.pallas import tpu as pltpu

EPS = 1e-5          # BatchNorm2d default eps (training-mode batch stats, gamma=1, beta=0)
LANE = 128
FILT_SIZES = [64, 128, 256, 512]
STRIDES = [1, 2, 1, 1]
DILATIONS = [1, 1, 2, 4]
EXPANSION = 4       # Bottleneck.expansion
HEAD_PAD = 24       # max ASPP rate: pad the backbone feature once, reuse for all rates
VMEM_LIMIT = 48 * 1024 * 1024   # explicit scoped-VMEM budget (v7x-safe)


def _rup(x, m):
    return (x + m - 1) // m * m


def _row_tile(m, cap=512):
    """Row tile: as large as possible, but split into >=2 grid blocks when M allows
    (v7x has 2 TensorCores that shard 'parallel' grid axes)."""
    if m > cap:
        return cap
    if m >= 16:
        return _rup((m + 1) // 2, 8)
    return m


# ---------------------------------------------------------------------------
# Weight-resident fused matmul:  C = A @ B  [+ bias] [+ relu] [+ BN sum/sumsq]
# B (K, N) is one full block with a constant index_map -> DMA'd once; grid over M only.
# ---------------------------------------------------------------------------
def _make_resident_mm_kernel(tm, m_true, needs_mask, has_bias, relu, stats):
    def kernel(*refs):
        a_ref, b_ref = refs[0], refs[1]
        idx = 2
        bias_ref = None
        if has_bias:
            bias_ref = refs[idx]; idx += 1
        o_ref = refs[idx]; idx += 1
        stat_ref = refs[idx] if stats else None

        acc = jnp.dot(a_ref[...], b_ref[...], preferred_element_type=jnp.float32)

        if stats:
            if needs_mask:   # mask rows beyond the true M of an edge tile
                rows = (pl.program_id(0) * tm
                        + jax.lax.broadcasted_iota(jnp.int32, (tm, 1), 0))
                accm = jnp.where(rows < m_true, acc, 0.0)
            else:
                accm = acc
            # only rows 0 (sum) and 1 (sumsq) of each 8-row group are consumed;
            # rows 2..7 are never read (no pad concat / extra stores).
            stat_ref[0:1, :] = jnp.sum(accm, axis=0, keepdims=True)
            stat_ref[1:2, :] = jnp.sum(accm * accm, axis=0, keepdims=True)

        y = acc
        if has_bias:
            y = y + bias_ref[...]
        if relu:
            y = jnp.maximum(y, 0.0)
        o_ref[...] = y.astype(o_ref.dtype)

    return kernel


@functools.partial(jax.jit, static_argnames=("relu", "stats", "out_dtype"))
def matmul_resident(a, b, bias=None, *, relu=False, stats=False,
                    out_dtype=jnp.bfloat16):
    M, K = a.shape
    Kb, N = b.shape
    assert K == Kb and K % LANE == 0 and N % LANE == 0
    # every weight in this model is <= 4 MiB; weights larger than ~8 MiB would need a
    # K/N-tiled path (none exist here: the big 3x3 head conv uses the row-tap kernel).
    assert K * N * 2 <= 8 * 1024 * 1024, "weight too large for resident path"
    tm = _row_tile(M, 512)
    gm = pl.cdiv(M, tm)
    needs_mask = (gm * tm != M)

    in_specs = [pl.BlockSpec((tm, K), lambda i: (i, 0)),
                pl.BlockSpec((K, N), lambda i: (0, 0))]   # weight: DMA'd once
    inputs = [a, b]
    if bias is not None:
        in_specs.append(pl.BlockSpec((1, N), lambda i: (0, 0)))
        inputs.append(bias)

    out_shape = [jax.ShapeDtypeStruct((M, N), out_dtype)]
    out_specs = [pl.BlockSpec((tm, N), lambda i: (i, 0))]
    if stats:
        out_shape.append(jax.ShapeDtypeStruct((gm * 8, N), jnp.float32))
        out_specs.append(pl.BlockSpec((8, N), lambda i: (i, 0)))

    return pl.pallas_call(
        _make_resident_mm_kernel(tm, M, needs_mask, bias is not None, relu, stats),
        out_shape=tuple(out_shape) if stats else out_shape[0],
        grid=(gm,),
        in_specs=in_specs,
        out_specs=tuple(out_specs) if stats else out_specs[0],
        compiler_params=pltpu.CompilerParams(
            dimension_semantics=("parallel",),
            vmem_limit_bytes=VMEM_LIMIT),
    )(*inputs)


# ---------------------------------------------------------------------------
# Row-tap 3x3 (dilated, stride-1) conv: no im2col.  One grid step = one output row;
# the 9 tap matmuls read three shifted padded input rows + a VMEM-resident weight slab.
# ---------------------------------------------------------------------------
def _pick_tap_tn(cinp, coutp, limit=10 * 1024 * 1024):
    for tn in (512, 256, 128):
        if coutp % tn == 0 and 18 * cinp * tn <= limit:   # 9*cinp*tn*2B bf16
            return tn
    return 128


def _make_rowtap_kernel(W, Cin, d, pad, tn, has_bias, relu):
    def kernel(*refs):
        a_refs = refs[0:3]
        w_ref = refs[3]
        idx = 4
        bias_ref = None
        if has_bias:
            bias_ref = refs[idx]; idx += 1
        o_ref = refs[idx]

        acc = jnp.zeros((W, tn), jnp.float32)
        for i in range(3):                       # vertical taps: three shifted row refs
            row = a_refs[i][...]
            row = row.reshape(row.shape[2], row.shape[3])      # (Wp, Cin)
            for j in range(3):                   # horizontal taps: static value slices
                start = pad + (j - 1) * d
                a = row[start:start + W, :]
                wt = w_ref[(i * 3 + j) * Cin:(i * 3 + j + 1) * Cin, :]
                acc = acc + jnp.dot(a, wt, preferred_element_type=jnp.float32)
        if has_bias:
            acc = acc + bias_ref[...]
        if relu:
            acc = jnp.maximum(acc, 0.0)
        o_ref[...] = acc.reshape(o_ref.shape).astype(o_ref.dtype)

    return kernel


@functools.partial(jax.jit, static_argnames=("d", "pad", "relu", "out_dtype"))
def conv3x3_rowtap(xp, w, *, d, pad, bias=None, relu=False,
                   out_dtype=jnp.bfloat16):
    """xp: spatially pre-padded NHWC input (pad >= d); w: (9*Cin_pad, Cout_pad) tap-major."""
    N, Hp, Wp, Cin = xp.shape
    H, W = Hp - 2 * pad, Wp - 2 * pad
    Kw, Coutp = w.shape
    assert Kw == 9 * Cin and Coutp % LANE == 0 and pad >= d
    tn = _pick_tap_tn(Cin, Coutp)
    gc = Coutp // tn

    def a_index(k):
        def idx(c, n, h):
            return (n, h + pad + (k - 1) * d, 0, 0)
        return idx

    in_specs = [pl.BlockSpec((1, 1, Wp, Cin), a_index(k)) for k in range(3)]
    in_specs.append(pl.BlockSpec((9 * Cin, tn), lambda c, n, h: (0, c)))
    inputs = [xp, xp, xp, w]
    if bias is not None:
        in_specs.append(pl.BlockSpec((1, tn), lambda c, n, h: (0, c)))
        inputs.append(bias)

    return pl.pallas_call(
        _make_rowtap_kernel(W, Cin, d, pad, tn, bias is not None, relu),
        out_shape=jax.ShapeDtypeStruct((N, H, W, Coutp), out_dtype),
        grid=(gc, N, H),    # cout outermost -> weight block reused across the (n, h) sweep
        in_specs=in_specs,
        out_specs=pl.BlockSpec((1, 1, W, tn), lambda c, n, h: (n, h, 0, c)),
        compiler_params=pltpu.CompilerParams(
            dimension_semantics=("parallel", "parallel", "parallel"),
            vmem_limit_bytes=VMEM_LIMIT),
    )(*inputs)


# ---------------------------------------------------------------------------
# BatchNorm (from raw sum/sumsq partials) + residual + ReLU + policy-lerp, fused.
# ---------------------------------------------------------------------------
def _make_bn_affine_kernel(count, S, relu, has_res, has_policy):
    inv = 1.0 / float(count)

    def kernel(*refs):
        x_ref, stat_ref = refs[0], refs[1]
        idx = 2
        r_ref = p_ref = None
        if has_res:
            r_ref = refs[idx]; idx += 1
        if has_policy:
            p_ref = refs[idx]; idx += 1
        o_ref = refs[idx]

        st = stat_ref[...]
        g = jax.lax.broadcasted_iota(jnp.int32, (S, 1), 0) % 8
        s = jnp.sum(jnp.where(g == 0, st, 0.0), axis=0, keepdims=True)
        q = jnp.sum(jnp.where(g == 1, st, 0.0), axis=0, keepdims=True)
        mean = s * inv
        var = jnp.maximum(q * inv - mean * mean, 0.0)   # biased variance (PyTorch train)
        scale = jax.lax.rsqrt(var + EPS)                # gamma = 1
        shift = -mean * scale                           # beta  = 0

        y = x_ref[...].astype(jnp.float32) * scale + shift
        r = None
        if has_res:
            r = r_ref[...].astype(jnp.float32)
            y = y + r
        if relu:
            y = jnp.maximum(y, 0.0)
        if has_policy:
            p = p_ref[0, 0]                             # SMEM scalar
            y = y * p + r * (1.0 - p)
        o_ref[...] = y.astype(o_ref.dtype)

    return kernel


@functools.partial(jax.jit, static_argnames=("relu",))
def pallas_bn_affine(x, stat, res=None, pscalar=None, *, relu=False):
    M, C = x.shape
    S = stat.shape[0]
    tr = _row_tile(M, 1024 if C <= 512 else 512)
    row_spec = pl.BlockSpec((tr, C), lambda i: (i, 0))
    in_specs = [row_spec, pl.BlockSpec((S, C), lambda i: (0, 0))]
    inputs = [x, stat]
    if res is not None:
        in_specs.append(row_spec)
        inputs.append(res)
    if pscalar is not None:
        assert res is not None
        in_specs.append(pl.BlockSpec(memory_space=pltpu.MemorySpace.SMEM))
        inputs.append(pscalar)
    return pl.pallas_call(
        _make_bn_affine_kernel(M, S, relu, res is not None, pscalar is not None),
        out_shape=jax.ShapeDtypeStruct((M, C), x.dtype),
        grid=(pl.cdiv(M, tr),),
        in_specs=in_specs,
        out_specs=row_spec,
        compiler_params=pltpu.CompilerParams(dimension_semantics=("parallel",)),
    )(*inputs)


# ---------------------------------------------------------------------------
# Per-channel sum / sumsq partials (for convs produced by the row-tap kernel)
# ---------------------------------------------------------------------------
def _make_stats_kernel(ts, m_true, needs_mask):
    def kernel(x_ref, stat_ref):
        xv = x_ref[...].astype(jnp.float32)
        if needs_mask:
            rows = (pl.program_id(0) * ts
                    + jax.lax.broadcasted_iota(jnp.int32, (ts, 1), 0))
            xv = jnp.where(rows < m_true, xv, 0.0)
        stat_ref[0:1, :] = jnp.sum(xv, axis=0, keepdims=True)
        stat_ref[1:2, :] = jnp.sum(xv * xv, axis=0, keepdims=True)
    return kernel


@jax.jit
def pallas_channel_stats(x):
    M, C = x.shape
    ts = _row_tile(M, 1024 if C <= 512 else 512)
    gm = pl.cdiv(M, ts)
    return pl.pallas_call(
        _make_stats_kernel(ts, M, gm * ts != M),
        out_shape=jax.ShapeDtypeStruct((gm * 8, C), jnp.float32),
        grid=(gm,),
        in_specs=[pl.BlockSpec((ts, C), lambda i: (i, 0))],
        out_specs=pl.BlockSpec((8, C), lambda i: (i, 0)),
        compiler_params=pltpu.CompilerParams(dimension_semantics=("parallel",)),
    )(x)


# ---------------------------------------------------------------------------
# N-way elementwise max (maxpool taps) and sum (ASPP branch accumulation)
# ---------------------------------------------------------------------------
def _max_kernel(*refs):
    o_ref = refs[-1]
    m = refs[0][...]
    for r in refs[1:-1]:
        m = jnp.maximum(m, r[...])
    o_ref[...] = m


@jax.jit
def pallas_max_of(slices):
    M, C = slices[0].shape
    tr = _row_tile(M, 1024)
    spec = pl.BlockSpec((tr, C), lambda i: (i, 0))
    return pl.pallas_call(
        _max_kernel,
        out_shape=jax.ShapeDtypeStruct((M, C), slices[0].dtype),
        grid=(pl.cdiv(M, tr),),
        in_specs=[spec] * len(slices),
        out_specs=spec,
        compiler_params=pltpu.CompilerParams(dimension_semantics=("parallel",)),
    )(*slices)


def _sum_kernel(*refs):
    o_ref = refs[-1]
    acc = refs[0][...].astype(jnp.float32)
    for r in refs[1:-1]:
        acc = acc + r[...].astype(jnp.float32)
    o_ref[...] = acc.astype(o_ref.dtype)


@jax.jit
def pallas_sum_of(arrs):
    M, C = arrs[0].shape
    tr = _row_tile(M, 1024)
    spec = pl.BlockSpec((tr, C), lambda i: (i, 0))
    return pl.pallas_call(
        _sum_kernel,
        out_shape=jax.ShapeDtypeStruct((M, C), jnp.float32),
        grid=(pl.cdiv(M, tr),),
        in_specs=[spec] * len(arrs),
        out_specs=spec,
        compiler_params=pltpu.CompilerParams(dimension_semantics=("parallel",)),
    )(*arrs)


# ---------------------------------------------------------------------------
# Glue (padding / slicing / reshape); all compute is in the Pallas kernels above.
# ---------------------------------------------------------------------------
def im2col(x, kh, kw, stride, dilation, padding):
    """Used only for the 7x7 stride-2 seed conv (runs once); K padded to 128."""
    N, H, W, C = x.shape
    Ho = (H + 2 * padding - dilation * (kh - 1) - 1) // stride + 1
    Wo = (W + 2 * padding - dilation * (kw - 1) - 1) // stride + 1
    xp = jnp.pad(x, ((0, 0), (padding, padding), (padding, padding), (0, 0)))
    cols = []
    for i in range(kh):
        for j in range(kw):
            hs, ws = i * dilation, j * dilation
            cols.append(xp[:, hs:hs + (Ho - 1) * stride + 1:stride,
                            ws:ws + (Wo - 1) * stride + 1:stride, :])
    K = kh * kw * C
    Kp = _rup(K, LANE)
    if Kp != K:
        cols.append(jnp.zeros((N, Ho, Wo, Kp - K), x.dtype))
    patches = jnp.concatenate(cols, axis=-1)
    return patches.reshape(N * Ho * Wo, Kp), Ho, Wo


def conv1x1(x, w, *, stride=1, bias=None, relu=False, stats=False,
            out_dtype=jnp.bfloat16):
    N = x.shape[0]
    xs = x if stride == 1 else x[:, ::stride, ::stride, :]
    Ho, Wo, Ci = xs.shape[1], xs.shape[2], xs.shape[3]
    a = xs.reshape(N * Ho * Wo, Ci)
    res = matmul_resident(a, w, bias, relu=relu, stats=stats, out_dtype=out_dtype)
    if stats:
        y, st = res
        return y.reshape(N, Ho, Wo, w.shape[1]), st
    return res.reshape(N, Ho, Wo, w.shape[1])


def max_pool2d(x, k=3, s=2, p=1):
    """MaxPool2d(kernel=3, stride=2, padding=1, ceil_mode=True) — PyTorch semantics.
    TODO(synk): still uses XLA-materialized shifted slices + one Pallas max kernel."""
    N, H, W, C = x.shape

    def out_dim(L):
        o = math.ceil((L + 2 * p - k) / s) + 1
        if (o - 1) * s >= L + p:
            o -= 1
        return o

    Ho, Wo = out_dim(H), out_dim(W)
    ph = max((Ho - 1) * s + k - H - p, 0)
    pw = max((Wo - 1) * s + k - W - p, 0)
    xp = jnp.pad(x, ((0, 0), (p, ph), (p, pw), (0, 0)), constant_values=-jnp.inf)
    slices = []
    for i in range(k):
        for j in range(k):
            sl = xp[:, i:i + (Ho - 1) * s + 1:s, j:j + (Wo - 1) * s + 1:s, :]
            slices.append(sl.reshape(N * Ho * Wo, C))
    out = pallas_max_of(tuple(slices))
    return out.reshape(N, Ho, Wo, C)


# ---------------------------------------------------------------------------
# Parameter construction (deterministic, in-script; every channel dim padded to 128)
# ---------------------------------------------------------------------------
def init_params(key, layers, num_classes_tasks, init_method='equal',
                init_neg_logits=None, skip_layer=0):
    keys = iter(jax.random.split(key, 4096))

    def w_1x1(cin, cout):
        cinp, coutp = _rup(cin, LANE), _rup(cout, LANE)
        w = 0.01 * jax.random.normal(next(keys), (cin, cout), jnp.float32)
        return jnp.pad(w, ((0, cinp - cin), (0, coutp - cout))).astype(jnp.bfloat16)

    def w_3x3(cin, cout):
        cinp, coutp = _rup(cin, LANE), _rup(cout, LANE)
        w = 0.01 * jax.random.normal(next(keys), (9, cin, cout), jnp.float32)
        w = jnp.pad(w, ((0, 0), (0, cinp - cin), (0, coutp - cout)))
        return w.reshape(9 * cinp, coutp).astype(jnp.bfloat16)   # tap-major

    def w_kxk_flat(cin, cout, k):
        K = k * k * cin
        Kp, coutp = _rup(K, LANE), _rup(cout, LANE)
        w = 0.01 * jax.random.normal(next(keys), (K, cout), jnp.float32)
        return jnp.pad(w, ((0, Kp - K), (0, coutp - cout))).astype(jnp.bfloat16)

    def bias(cout):
        coutp = _rup(cout, LANE)
        b = 0.01 * jax.random.normal(next(keys), (cout,), jnp.float32)
        return jnp.pad(b, (0, coutp - cout)).reshape(1, coutp)

    params = {'layers': tuple(layers), 'skip_layer': skip_layer}
    params['conv1'] = w_kxk_flat(3, 64, 7)

    inplanes = 64
    blocks, ds = [], []
    for planes, nblocks, stride, dil in zip(FILT_SIZES, layers, STRIDES, DILATIONS):
        need_ds = (stride != 1 or inplanes != planes * EXPANSION
                   or dil == 2 or dil == 4)
        ds.append(w_1x1(inplanes, planes * EXPANSION) if need_ds else None)
        seg = []
        for b in range(nblocks):
            cin = inplanes if b == 0 else planes * EXPANSION
            seg.append({'conv1': w_1x1(cin, planes),
                        'conv2': w_3x3(planes, planes),
                        'conv3': w_1x1(planes, planes * EXPANSION),
                        'stride': stride if b == 0 else 1,
                        'dilation': dil})
        inplanes = planes * EXPANSION
        blocks.append(seg)
    params['blocks'] = blocks
    params['ds'] = ds

    feat_c = 512 * EXPANSION
    heads = []
    for nc in num_classes_tasks:
        task_heads = []
        for rate in (6, 12, 18, 24):
            task_heads.append({
                'rate': rate, 'nc': nc,
                'w1': w_3x3(feat_c, 1024), 'b1': bias(1024),
                'w2': w_1x1(1024, 1024), 'b2': bias(1024),
                'w3': w_1x1(1024, nc), 'b3': bias(nc),   # logits lane-padded to 128
            })
        heads.append(task_heads)
    params['heads'] = heads

    # reset_logits()
    num_layers = sum(layers)
    logits = []
    for _ in num_classes_tasks:
        n = num_layers - skip_layer
        if init_method == 'all_chosen':
            assert init_neg_logits is not None
            tl = init_neg_logits * jnp.ones((n, 2), jnp.float32)
            tl = tl.at[:, 0].set(0.0)
        elif init_method == 'equal':
            tl = 0.5 * jnp.ones((n, 2), jnp.float32)
        elif init_method == 'random':
            tl = 0.001 * jax.random.normal(next(keys), (n, 2), jnp.float32)
        else:
            raise NotImplementedError(init_method)
        logits.append(tl)
    params['task_logits'] = logits
    return params


# ---------------------------------------------------------------------------
# Model forward
# ---------------------------------------------------------------------------
def backbone_forward(params, x, policy=None):
    N = x.shape[0]
    # seed: conv7x7/s2 -> BN -> ReLU -> maxpool3x3/s2 (ceil)
    a, Ho, Wo = im2col(x, 7, 7, 2, 1, 3)
    y, st = matmul_resident(a, params['conv1'], stats=True)
    y = pallas_bn_affine(y, st, relu=True)
    x = y.reshape(N, Ho, Wo, params['conv1'].shape[1])
    x = max_pool2d(x)

    t = 0
    for seg in range(4):
        for b, blk in enumerate(params['blocks'][seg]):
            stride, dil = blk['stride'], blk['dilation']
            if b == 0 and params['ds'][seg] is not None:
                r, rst = conv1x1(x, params['ds'][seg], stride=stride, stats=True)
                rn, rh, rw, rc = r.shape
                residual = pallas_bn_affine(
                    r.reshape(-1, rc), rst, relu=False).reshape(rn, rh, rw, rc)
            else:
                residual = x

            # Bottleneck: 1x1 (stride) -> BN+ReLU -> 3x3 dilated (row-tap) -> BN+ReLU
            #             -> 1x1 -> BN + residual + ReLU (+ policy lerp), all fused.
            out, s1 = conv1x1(x, blk['conv1'], stride=stride, stats=True)
            on, oh, ow, oc = out.shape
            out = pallas_bn_affine(out.reshape(-1, oc), s1,
                                   relu=True).reshape(on, oh, ow, oc)

            xp = jnp.pad(out, ((0, 0), (dil, dil), (dil, dil), (0, 0)))
            out = conv3x3_rowtap(xp, blk['conv2'], d=dil, pad=dil)
            c2 = out.shape[3]
            st2 = pallas_channel_stats(out.reshape(-1, c2))
            out = pallas_bn_affine(out.reshape(-1, c2), st2,
                                   relu=True).reshape(on, oh, ow, c2)

            out, s3 = conv1x1(out, blk['conv3'], stats=True)
            c3 = out.shape[3]
            p = None
            if policy is not None:
                p = policy[t].reshape(1, 1).astype(jnp.float32)
            x = pallas_bn_affine(out.reshape(-1, c3), s3,
                                 res=residual.reshape(-1, c3),
                                 pscalar=p, relu=True).reshape(on, oh, ow, c3)
            t += 1
    return x


def classification_module(head, xp, H, W):
    # 3x3 dilated conv (row-tap, bias+ReLU fused), then two 1x1 convs (bias[,ReLU] fused)
    N = xp.shape[0]
    y = conv3x3_rowtap(xp, head['w1'], d=head['rate'], pad=HEAD_PAD,
                       bias=head['b1'], relu=True)
    M = N * H * W
    h = matmul_resident(y.reshape(M, y.shape[3]), head['w2'], head['b2'], relu=True)
    o = matmul_resident(h, head['w3'], head['b3'], relu=False,
                        out_dtype=jnp.float32)      # (M, 128) f32, lane-padded logits
    return o


def mtl_rl_forward(params, img_nchw, mode='full', num_train_layers=None):
    num_tasks = len(params['heads'])
    num_layers = sum(params['layers'])
    if num_train_layers is None:
        num_train_layers = num_layers - params['skip_layer']
    num_train_layers = min(num_layers - params['skip_layer'], num_train_layers)
    skip = num_layers - num_train_layers

    x = jnp.transpose(img_nchw, (0, 2, 3, 1)).astype(jnp.bfloat16)   # NCHW -> NHWC bf16

    if mode == 'full':
        policys = [None] * num_tasks
    elif mode == 'pred':
        policys = []
        for t in range(num_tasks):
            logit = jax.nn.softmax(params['task_logits'][t], axis=-1)
            policys.append(jnp.argmax(logit, axis=-1).astype(jnp.float32))
    else:
        # TODO(synk): mode=='random' (epsilon-greedy merge of pred/random logits) not implemented.
        raise NotImplementedError(mode)

    padding_policys = []
    for t in range(num_tasks):
        if policys[t] is None:
            padding_policys.append(None)
        else:
            pad = jnp.ones((skip,), jnp.float32)
            padding_policys.append(
                jnp.concatenate([pad, policys[t][-num_train_layers:]], axis=0))

    feats, shared = [], None
    for t in range(num_tasks):
        if padding_policys[t] is None:
            if shared is None:   # policy=None -> identical backbone pass; compute once
                shared = backbone_forward(params, x, None)
            feats.append(shared)
        else:
            feats.append(backbone_forward(params, x, padding_policys[t]))

    outputs = []
    for t in range(num_tasks):
        feat = feats[t]
        N, Hf, Wf, _ = feat.shape
        # pad the ASPP input once (max rate) and reuse for all four dilation rates
        xp = jnp.pad(feat, ((0, 0), (HEAD_PAD, HEAD_PAD), (HEAD_PAD, HEAD_PAD), (0, 0)))
        branch = [classification_module(h, xp, Hf, Wf) for h in params['heads'][t]]
        o2d = pallas_sum_of(tuple(branch))        # single 4-way add of the ASPP branches
        nc = params['heads'][t][0]['nc']
        o = o2d.reshape(N, Hf, Wf, -1)[:, :, :, :nc]
        outputs.append(jnp.transpose(o, (0, 3, 1, 2)))   # NHWC -> NCHW, f32
    return outputs, padding_policys


# ---------------------------------------------------------------------------
if __name__ == "__main__":
    root = jax.random.PRNGKey(0)
    k_params, k_img = jax.random.split(root)

    layers = [1, 1, 1, 1]        # one Bottleneck (expansion=4) per segment
    num_classes_tasks = (2, 3)   # two tasks
    params = init_params(k_params, layers, num_classes_tasks,
                         init_method='equal', skip_layer=0)

    img = jax.random.normal(k_img, (2, 3, 32, 32), jnp.float32)   # NCHW like PyTorch

    outputs, _ = mtl_rl_forward(params, img, mode='full')
    for o in outputs:
        jax.block_until_ready(o)

    # also exercise the fused policy-mixing path (mode='pred', 1-D policies)
    outputs_pred, pols = mtl_rl_forward(params, img, mode='pred')
    for o in outputs_pred:
        jax.block_until_ready(o)

    print("KERNEL_OK")
</pallas_src>

<mosaic_0001>
module attributes {stable_mosaic.version = 11 : i64} {
  func.func @kernel(%arg0: i32, %arg1: memref<256x256xbf16, #tpu.memory_space<vmem>>, %arg2: memref<256x128xbf16, #tpu.memory_space<vmem>>, %arg3: memref<256x128xbf16, #tpu.memory_space<vmem>>, %arg4: memref<8x128xf32, #tpu.memory_space<vmem>>) attributes {dimension_semantics = [#tpu.dimension_semantics<parallel>], iteration_bounds = array<i64: 2>, scalar_prefetch = 0 : i64, scratch_operands = 0 : i64, tpu.core_type = #tpu.core_type<tc>, window_params = [{transform_indices = @transform_0, window_bounds = array<i64: 256, 256>}, {pipeline_mode = #tpu.pipeline_mode<synchronous>, transform_indices = @transform_1, window_bounds = array<i64: 256, 128>}, {transform_indices = @transform_2, window_bounds = array<i64: 256, 128>}, {transform_indices = @transform_3, window_bounds = array<i64: 8, 128>}]} {
    %c0 = arith.constant 0 : index
    %c0_0 = arith.constant 0 : index
    %0 = vector.load %arg1[%c0, %c0_0] : memref<256x256xbf16, #tpu.memory_space<vmem>>, vector<256x256xbf16>
    %c0_1 = arith.constant 0 : index
    %c0_2 = arith.constant 0 : index
    %1 = vector.load %arg2[%c0_1, %c0_2] : memref<256x128xbf16, #tpu.memory_space<vmem>>, vector<256x128xbf16>
    %cst = arith.constant dense<0.000000e+00> : vector<256x128xf32>
    %2 = tpu.matmul %0, %1, %cst {dimension_numbers = #tpu.dot_dimension_numbers<[1], [0], [0], [1], [0, 0, 1, 1], [], []>} : vector<256x256xbf16>, vector<256x128xbf16>, vector<256x128xf32> -> vector<256x128xf32>
    %cst_3 = arith.constant dense<0.000000e+00> : vector<128xf32>
    %3 = vector.multi_reduction <add>, %2, %cst_3 [0] : vector<256x128xf32> to vector<128xf32>
    %4 = vector.shape_cast %3 : vector<128xf32> to vector<1x128xf32>
    %c0_4 = arith.constant 0 : index
    %c0_5 = arith.constant 0 : index
    %5 = vector.load %arg4[%c0_4, %c0_5] : memref<8x128xf32, #tpu.memory_space<vmem>>, vector<1x128xf32>
    tpu.vector_store %arg4[%c0_4, %c0_5], %4 {strides = array<i32>} : memref<8x128xf32, #tpu.memory_space<vmem>>, vector<1x128xf32>,
    %6 = arith.mulf %2, %2 : vector<256x128xf32>
    %cst_6 = arith.constant dense<0.000000e+00> : vector<128xf32>
    %7 = vector.multi_reduction <add>, %6, %cst_6 [0] : vector<256x128xf32> to vector<128xf32>
    %8 = vector.shape_cast %7 : vector<128xf32> to vector<1x128xf32>
    %c1 = arith.constant 1 : index
    %c0_7 = arith.constant 0 : index
    %9 = vector.load %arg4[%c1, %c0_7] : memref<8x128xf32, #tpu.memory_space<vmem>>, vector<1x128xf32>
    tpu.vector_store %arg4[%c1, %c0_7], %8 {strides = array<i32>} : memref<8x128xf32, #tpu.memory_space<vmem>>, vector<1x128xf32>,
    %10 = arith.truncf %2 : vector<256x128xf32> to vector<256x128xbf16>
    %c0_8 = arith.constant 0 : index
    %c0_9 = arith.constant 0 : index
    %11 = vector.load %arg3[%c0_8, %c0_9] : memref<256x128xbf16, #tpu.memory_space<vmem>>, vector<256x128xbf16>
    tpu.vector_store %arg3[%c0_8, %c0_9], %10 {strides = array<i32>} : memref<256x128xbf16, #tpu.memory_space<vmem>>, vector<256x128xbf16>,
    return
  }
  func.func @transform_0(%arg0: i32) -> (i32, i32) {
    %c0_i32 = arith.constant 0 : i32
    %c0_i32_0 = arith.constant 0 : i32
    return %arg0, %c0_i32 : i32, i32
  }
  func.func @transform_1(%arg0: i32) -> (i32, i32) {
    %c0_i32 = arith.constant 0 : i32
    %c0_i32_0 = arith.constant 0 : i32
    %c0_i32_1 = arith.constant 0 : i32
    return %c0_i32, %c0_i32_0 : i32, i32
  }
  func.func @transform_2(%arg0: i32) -> (i32, i32) {
    %c0_i32 = arith.constant 0 : i32
    %c0_i32_0 = arith.constant 0 : i32
    return %arg0, %c0_i32 : i32, i32
  }
  func.func @transform_3(%arg0: i32) -> (i32, i32) {
    %c0_i32 = arith.constant 0 : i32
    %c0_i32_0 = arith.constant 0 : i32
    return %arg0, %c0_i32 : i32, i32
  }
}

</mosaic_0001>

<llo_original>
// kernel: matmul_resident.1
$region0: #{matmul_resident.1}
  #allocation0 [shape = 'u32[]', space=smem, size = 0x4, offset = 0x4, fixed_abs, tag = 'smem constant byte address 0x4 - core index']
  #allocation1 [shape = 'u32[144,128]{1,0:T(1,128)}', space=vmem, size = 0x12000, scoped, tag = 'internal scratch']
  %s0 = inlined_call_operand.hbm [shape: bf16[512,256], index: 0, kind: input, shape index: {}]
  %s1 = inlined_call_operand.hbm [shape: bf16[256,128], index: 1, kind: input, shape index: {}]
  %s2 = inlined_call_operand.hbm [shape: bf16[512,128], index: 2, kind: output, shape index: {0}]
  %s3 = inlined_call_operand.hbm [shape: f32[16,128], index: 3, kind: output, shape index: {1}]
  %4 = xla_tuple %s2, %s3
  %s5 = sld [smem:[#allocation0]]
  $region57: #{matmul_resident.1} parent=0
    _
  %s7 = ssub.s32 1, %s5
  %s8 = scalar_select 0, %s7, %s5
  $region1: #{matmul_resident.1} parent=0
    #allocation2 [shape = 'u8[262144]{0}', space=vmem, size = 0x40000, scoped, tag = 'input window, operand 0']
    #allocation3 [shape = 's32[2]{0}', space=sflag, size = 0x8, scoped, tag = 'scoped memory for matmul_resident.1']
    #allocation4 [shape = 's32[2]{0}', space=sflag, size = 0x8, scoped, tag = 'scoped memory for matmul_resident.1']
    #allocation5 [shape = 'u8[65536]{0}', space=vmem, size = 0x10000, scoped, tag = 'input window, operand 1, single buffered']
    #allocation6 [shape = 's32[1]{0}', space=sflag, size = 0x4, scoped, tag = 'scoped memory for matmul_resident.1']
    #allocation7 [shape = 'u8[131072]{0}', space=vmem, size = 0x20000, scoped, tag = 'output window, operand 0']
    #allocation8 [shape = 'u8[8192]{0}', space=vmem, size = 0x2000, scoped, tag = 'output window, operand 1']
    #allocation9 [shape = 's32[2]{0}', space=sflag, size = 0x8, scoped, tag = 'scoped memory for matmul_resident.1']
    %9 = vsyncpa [#allocation3], 0
    %s10 = scalar_lea.sflag [#allocation3], 1
    %11 = vsyncpa %s10, 0
    %12 = vsyncpa [#allocation6], 0
    %13 = vsyncpa [#allocation4], 0
    %s14 = scalar_lea.sflag [#allocation4], 1
    %15 = vsyncpa %s14, 0
    %16 = vsyncpa [#allocation9], 0
    %s17 = scalar_lea.sflag [#allocation9], 1
    %18 = vsyncpa %s17, 0
    loop: start=0, step=1, limit=4
    $region2: #{matmul_resident.1} parent=1 // loop_pre_header
      _
    $region3: #{matmul_resident.1} parent=1 // loop_header
      %s20 = sphi 0, %s24
      %p21 = scmp.ge.s32.totalorder %s20, 4
      %s30 = sphi 0, %s32
      %s33 = sphi 0, %s30
      %s34 = sphi 0, %s33
      %s50 = sphi 0, %s34
      %s54 = sphi 0, %s54
      %s56 = sphi 0, %s54
      %s57 = sphi 0, %s56
      %s71 = sphi 0, %s57
      %s77 = sphi 0, %s79
      %s80 = sphi 0, %s77
      %s81 = sphi 0, %s80
      %s97 = sphi 0, %s81
      %s103 = sphi 0, %s105
      %s106 = sphi 0, %s103
      %s107 = sphi 0, %s106
      %s123 = sphi 0, %s107
    $region4: #{matmul_resident.1} parent=1 // loop_header_branch
      %23 = sbr.rel (%p21) target = $region8
    $region5: #{matmul_resident.1} parent=1 // loop_body
      %s25 = ssub.s32 %s20, 1
      %s26 = ssub.s32 %s20, 2
      %s27 = sadd.s32 %s20, 1
      %s28 = ssub.s32 %s20, %s27
      %p29 = scmp.eq.s32.totalorder %s28, 0
      %s31 = sadd.s32 %s30, 1
      %s32 = scalar_select %p29, %s30, %s31
      %p35 = pneg %p29
      %p36 = scmp.eq.s32.totalorder %s20, 1
      %p37 = por %p35, %p36
      %p38 = scmp.ne.s32.totalorder %s30, %s33
      %p39 = scmp.eq.s32.totalorder %s20, 0
      %p40 = por %p38, %p39
      %p41 = scmp.ne.s32.totalorder %s30, %s33
      %p42 = scmp.eq.s32.totalorder %s25, 1
      %p43 = por %p41, %p42
      %p44 = scmp.ne.s32.totalorder %s33, %s34
      %p45 = scmp.eq.s32.totalorder %s25, 0
      %p46 = por %p44, %p45
      %p47 = scmp.ne.s32.totalorder %s33, %s34
      %p48 = scmp.eq.s32.totalorder %s26, 1
      %p49 = por %p47, %p48
      %p51 = scmp.ne.s32.totalorder %s34, %s50
      %p52 = scmp.eq.s32.totalorder %s26, 0
      %p53 = por %p51, %p52
      %s55 = sadd.s32 %s54, 1
      %p58 = scmp.eq.s32.totalorder %s20, 1
      %p59 = scmp.ne.s32.totalorder %s54, %s56
      %p60 = scmp.eq.s32.totalorder %s20, 0
      %p61 = por %p59, %p60
      %p62 = scmp.ne.s32.totalorder %s54, %s56
      %p63 = scmp.eq.s32.totalorder %s25, 1
      %p64 = por %p62, %p63
      %p65 = scmp.ne.s32.totalorder %s56, %s57
      %p66 = scmp.eq.s32.totalorder %s25, 0
      %p67 = por %p65, %p66
      %p68 = scmp.ne.s32.totalorder %s56, %s57
      %p69 = scmp.eq.s32.totalorder %s26, 1
      %p70 = por %p68, %p69
      %p72 = scmp.ne.s32.totalorder %s57, %s71
      %p73 = scmp.eq.s32.totalorder %s26, 0
      %p74 = por %p72, %p73
      %s75 = ssub.s32 %s20, %s27
      %p76 = scmp.eq.s32.totalorder %s75, 0
      %s78 = sadd.s32 %s77, 1
      %s79 = scalar_select %p76, %s77, %s78
      %p82 = pneg %p76
      %p83 = scmp.eq.s32.totalorder %s20, 1
      %p84 = por %p82, %p83
      %p85 = scmp.ne.s32.totalorder %s77, %s80
      %p86 = scmp.eq.s32.totalorder %s20, 0
      %p87 = por %p85, %p86
      %p88 = scmp.ne.s32.totalorder %s77, %s80
      %p89 = scmp.eq.s32.totalorder %s25, 1
      %p90 = por %p88, %p89
      %p91 = scmp.ne.s32.totalorder %s80, %s81
      %p92 = scmp.eq.s32.totalorder %s25, 0
      %p93 = por %p91, %p92
      %p94 = scmp.ne.s32.totalorder %s80, %s81
      %p95 = scmp.eq.s32.totalorder %s26, 1
      %p96 = por %p94, %p95
      %p98 = scmp.ne.s32.totalorder %s81, %s97
      %p99 = scmp.eq.s32.totalorder %s26, 0
      %p100 = por %p98, %p99
      %s101 = ssub.s32 %s20, %s27
      %p102 = scmp.eq.s32.totalorder %s101, 0
      %s104 = sadd.s32 %s103, 1
      %s105 = scalar_select %p102, %s103, %s104
      %p108 = pneg %p102
      %p109 = scmp.eq.s32.totalorder %s20, 1
      %p110 = por %p108, %p109
      %p111 = scmp.ne.s32.totalorder %s103, %s106
      %p112 = scmp.eq.s32.totalorder %s20, 0
      %p113 = por %p111, %p112
      %p114 = scmp.ne.s32.totalorder %s103, %s106
      %p115 = scmp.eq.s32.totalorder %s25, 1
      %p116 = por %p114, %p115
      %p117 = scmp.ne.s32.totalorder %s106, %s107
      %p118 = scmp.eq.s32.totalorder %s25, 0
      %p119 = por %p117, %p118
      %p120 = scmp.ne.s32.totalorder %s106, %s107
      %p121 = scmp.eq.s32.totalorder %s26, 1
      %p122 = por %p120, %p121
      %p124 = scmp.ne.s32.totalorder %s107, %s123
      %p125 = scmp.eq.s32.totalorder %s26, 0
      %p126 = por %p124, %p125
      %p127 = scmp.le.s32.totalorder 1, %s20
      %p128 = scmp.lt.s32.totalorder %s20, 3
      %p129 = pnand %p127, %p128
      %p130 = pneg %p129
      // Predicated region
      $region9: #{matmul_resident.1} parent=5 // pred_check
        _
      $region10: #{matmul_resident.1} parent=5 // pred_check_branch
        %132 = sbr.rel (%p129) target = $region12
      $region11: #{matmul_resident.1} parent=5 // pred_region
        %s133 = ssub.s32 %s20, 1
        // Predicated region
        $region13: #{matmul_resident.1} parent=11 // pred_check
          %p134 = pneg %p67
        $region14: #{matmul_resident.1} parent=11 // pred_check_branch
          %136 = sbr.rel (%p134) target = $region16
        $region15: #{matmul_resident.1} parent=11 // pred_region
          %s138 = ssub.s32 2048, 2048
          %139 = vsyncadd [#allocation6], %s138
          %s140 = sshll.u32 [#allocation5], 4
          %s141 = int_to_ptr.vmem [resolvable:$true] %s140
          %146 = dma.hbm_to_vmem [thread:$0]  %s1, 2048, %s141, [#allocation6], 64, 64, 4
        $region16: #{matmul_resident.1} parent=11 // pred_fallthru
          _
      $region12: #{matmul_resident.1} parent=5 // pred_fallthru
        _
      %p147 = scmp.lt.s32.totalorder %s20, 2
      // Predicated region
      $region17: #{matmul_resident.1} parent=5 // pred_check
        %p148 = pneg %p147
      $region18: #{matmul_resident.1} parent=5 // pred_check_branch
        %150 = sbr.rel (%p148) target = $region20
      $region19: #{matmul_resident.1} parent=5 // pred_region
        // Predicated region
        $region21: #{matmul_resident.1} parent=19 // pred_check
          %p151 = pneg %p40
        $region22: #{matmul_resident.1} parent=19 // pred_check_branch
          %153 = sbr.rel (%p151) target = $region24
        $region23: #{matmul_resident.1} parent=19 // pred_region
          %s154 = sand.u32 %s30, 1
          %s155 = scalar_lea.sflag [#allocation3], %s154
          %s156 = sand.u32 %s30, 1
          %s157 = smul.addr %s156, 256
          %s158 = scalar_lea.vmem [#allocation2], %s157
          %s159 = smul.u32 32, %s20
          %s161 = ssub.s32 4096, 4096
          %162 = vsyncadd %s155, %s161
          %s163 = smul.addr %s159, 2
          %s164 = smul.addr %s163, 64
          %s165 = scalar_lea.hbm %s0, %s164
          %s166 = sshll.u32 %s158, 4
          %s167 = int_to_ptr.vmem [resolvable:$true] %s166
          %172 = dma.hbm_to_vmem [thread:$0]  %s165, 4096, %s167, %s155, 128, 128, 8
        $region24: #{matmul_resident.1} parent=19 // pred_fallthru
          _
      $region20: #{matmul_resident.1} parent=5 // pred_fallthru
        _
      %p173 = scmp.le.s32.totalorder 1, %s20
      %p174 = scmp.lt.s32.totalorder %s20, 3
      %p175 = pnand %p173, %p174
      %p176 = pneg %p175
      // Predicated region
      $region25: #{matmul_resident.1} parent=5 // pred_check
        _
      $region26: #{matmul_resident.1} parent=5 // pred_check_branch
        %178 = sbr.rel (%p175) target = $region28
      $region27: #{matmul_resident.1} parent=5 // pred_region
        %s179 = ssub.s32 %s20, 1
        %s180 = sand.u32 %s33, 1
        %s181 = scalar_lea.sflag [#allocation3], %s180
        %s182 = sand.u32 %s33, 1
        %s183 = smul.addr %s182, 256
        %s184 = scalar_lea.vmem [#allocation2], %s183
        // Predicated region
        $region29: #{matmul_resident.1} parent=27 // pred_check
          %p185 = pneg %p46
        $region30: #{matmul_resident.1} parent=27 // pred_check_branch
          %187 = sbr.rel (%p185) target = $region32
        $region31: #{matmul_resident.1} parent=27 // pred_region
          %188 = dma.done %s181, 4096
        $region32: #{matmul_resident.1} parent=27 // pred_fallthru
          _
        // Predicated region
        $region33: #{matmul_resident.1} parent=27 // pred_check
          %p189 = pneg %p67
        $region34: #{matmul_resident.1} parent=27 // pred_check_branch
          %191 = sbr.rel (%p189) target = $region36
        $region35: #{matmul_resident.1} parent=27 // pred_region
          %192 = dma.done [#allocation6], 2048
        $region36: #{matmul_resident.1} parent=27 // pred_fallthru
          _
        %s193 = sand.u32 %s33, 1
        %s194 = scalar_lea.sflag [#allocation3], %s193
        %s195 = sand.u32 %s33, 1
        %s196 = smul.addr %s195, 256
        %s197 = scalar_lea.vmem [#allocation2], %s196
        %p198 = pneg %p46
        %p199 = pneg %p43
        %p200 = pneg %p67
        %p201 = pneg %p64
        %p202 = pneg %p93
        %p203 = pneg %p90
        %s204 = sand.u32 %s80, 1
        %s205 = scalar_lea.sflag [#allocation4], %s204
        %s206 = sand.u32 %s80, 1
        %s207 = smul.addr %s206, 128
        %s208 = scalar_lea.vmem [#allocation7], %s207
        %p209 = pneg %p119
        %p210 = pneg %p116
        %s211 = sand.u32 %s106, 1
        %s212 = scalar_lea.sflag [#allocation9], %s211
        %s213 = sand.u32 %s106, 1
        %s214 = smul.addr %s213, 8
        %s215 = scalar_lea.vmem [#allocation8], %s214
        %s216 = smul.u32 32, %s25
        %s217 = smul.u32 32, %s25
        %v219 = vld [vmem:[%s184] sm:$0xff]
        %v220 = vld [vmem:[%s184 + $0x8] sm:$0xff]
        %v221 = vld [vmem:[%s184 + $0x10] sm:$0xff]
        %v222 = vld [vmem:[%s184 + $0x18] sm:$0xff]
        %v223 = vld [vmem:[%s184 + $0x20] sm:$0xff]
        %v224 = vld [vmem:[%s184 + $0x28] sm:$0xff]
        %v225 = vld [vmem:[%s184 + $0x30] sm:$0xff]
        %v226 = vld [vmem:[%s184 + $0x38] sm:$0xff]
        %v227 = vld [vmem:[%s184 + $0x40] sm:$0xff]
        %v228 = vld [vmem:[%s184 + $0x48] sm:$0xff]
        %v229 = vld [vmem:[%s184 + $0x50] sm:$0xff]
        %v230 = vld [vmem:[%s184 + $0x58] sm:$0xff]
        %v231 = vld [vmem:[%s184 + $0x60] sm:$0xff]
        %v232 = vld [vmem:[%s184 + $0x68] sm:$0xff]
        %v233 = vld [vmem:[%s184 + $0x70] sm:$0xff]
        %v234 = vld [vmem:[%s184 + $0x78] sm:$0xff]
        %v235 = vld [vmem:[%s184 + $0x80] sm:$0xff]
        %v236 = vld [vmem:[%s184 + $0x88] sm:$0xff]
        %v237 = vld [vmem:[%s184 + $0x90] sm:$0xff]
        %v238 = vld [vmem:[%s184 + $0x98] sm:$0xff]
        %v239 = vld [vmem:[%s184 + $0xa0] sm:$0xff]
        %v240 = vld [vmem:[%s184 + $0xa8] sm:$0xff]
        %v241 = vld [vmem:[%s184 + $0xb0] sm:$0xff]
        %v242 = vld [vmem:[%s184 + $0xb8] sm:$0xff]
        %v243 = vld [vmem:[%s184 + $0xc0] sm:$0xff]
        %v244 = vld [vmem:[%s184 + $0xc8] sm:$0xff]
        %v245 = vld [vmem:[%s184 + $0xd0] sm:$0xff]
        %v246 = vld [vmem:[%s184 + $0xd8] sm:$0xff]
        %v247 = vld [vmem:[%s184 + $0xe0] sm:$0xff]
        %v248 = vld [vmem:[%s184 + $0xe8] sm:$0xff]
        %v249 = vld [vmem:[%s184 + $0xf0] sm:$0xff]
        %v250 = vld [vmem:[%s184 + $0xf8] sm:$0xff]
        %v251 = vld [vmem:[#allocation5] sm:$0xf]
        %v252 = vld [vmem:[#allocation5 + $0x4] sm:$0xf]
        %v253 = vld [vmem:[#allocation5 + $0x8] sm:$0xf]
        %v254 = vld [vmem:[#allocation5 + $0xc] sm:$0xf]
        %v255 = vld [vmem:[#allocation5 + $0x10] sm:$0xf]
        %v256 = vld [vmem:[#allocation5 + $0x14] sm:$0xf]
        %v257 = vld [vmem:[#allocation5 + $0x18] sm:$0xf]
        %v258 = vld [vmem:[#allocation5 + $0x1c] sm:$0xf]
        %v259 = vld [vmem:[#allocation5 + $0x20] sm:$0xf]
        %v260 = vld [vmem:[#allocation5 + $0x24] sm:$0xf]
        %v261 = vld [vmem:[#allocation5 + $0x28] sm:$0xf]
        %v262 = vld [vmem:[#allocation5 + $0x2c] sm:$0xf]
        %v263 = vld [vmem:[#allocation5 + $0x30] sm:$0xf]
        %v264 = vld [vmem:[#allocation5 + $0x34] sm:$0xf]
        %v265 = vld [vmem:[#allocation5 + $0x38] sm:$0xf]
        %v266 = vld [vmem:[#allocation5 + $0x3c] sm:$0xf]
        %v267 = vld [vmem:[#allocation5 + $0x40] sm:$0xf]
        %v268 = vld [vmem:[#allocation5 + $0x44] sm:$0xf]
        %v269 = vld [vmem:[#allocation5 + $0x48] sm:$0xf]
        %v270 = vld [vmem:[#allocation5 + $0x4c] sm:$0xf]
        %v271 = vld [vmem:[#allocation5 + $0x50] sm:$0xf]
        %v272 = vld [vmem:[#allocation5 + $0x54] sm:$0xf]
        %v273 = vld [vmem:[#allocation5 + $0x58] sm:$0xf]
        %v274 = vld [vmem:[#allocation5 + $0x5c] sm:$0xf]
        %v275 = vld [vmem:[#allocation5 + $0x60] sm:$0xf]
        %v276 = vld [vmem:[#allocation5 + $0x64] sm:$0xf]
        %v277 = vld [vmem:[#allocation5 + $0x68] sm:$0xf]
        %v278 = vld [vmem:[#allocation5 + $0x6c] sm:$0xf]
        %v279 = vld [vmem:[#allocation5 + $0x70] sm:$0xf]
        %v280 = vld [vmem:[#allocation5 + $0x74] sm:$0xf]
        %v281 = vld [vmem:[#allocation5 + $0x78] sm:$0xf]
        %v282 = vld [vmem:[#allocation5 + $0x7c] sm:$0xf]
        %v315 = vunpack.c.l.b16 %v219
        %v316 = vunpack.c.h.b16 %v219
        %v317 = vunpack.c.l.b16 %v220
        %v318 = vunpack.c.h.b16 %v220
        %v319 = vunpack.c.l.b16 %v221
        %v320 = vunpack.c.h.b16 %v221
        %v321 = vunpack.c.l.b16 %v222
        %v322 = vunpack.c.h.b16 %v222
        %v323 = vunpack.c.l.b16 %v223
        %v324 = vunpack.c.h.b16 %v223
        %v325 = vunpack.c.l.b16 %v224
        %v326 = vunpack.c.h.b16 %v224
        %v327 = vunpack.c.l.b16 %v225
        %v328 = vunpack.c.h.b16 %v225
        %v329 = vunpack.c.l.b16 %v226
        %v330 = vunpack.c.h.b16 %v226
        %v331 = vunpack.c.l.b16 %v227
        %v332 = vunpack.c.h.b16 %v227
        %v333 = vunpack.c.l.b16 %v228
        %v334 = vunpack.c.h.b16 %v228
        %v335 = vunpack.c.l.b16 %v229
        %v336 = vunpack.c.h.b16 %v229
        %v337 = vunpack.c.l.b16 %v230
        %v338 = vunpack.c.h.b16 %v230
        %v339 = vunpack.c.l.b16 %v231
        %v340 = vunpack.c.h.b16 %v231
        %v341 = vunpack.c.l.b16 %v232
        %v342 = vunpack.c.h.b16 %v232
        %v343 = vunpack.c.l.b16 %v233
        %v344 = vunpack.c.h.b16 %v233
        %v345 = vunpack.c.l.b16 %v234
        %v346 = vunpack.c.h.b16 %v234
        %v347 = vunpack.c.l.b16 %v235
        %v348 = vunpack.c.h.b16 %v235
        %v349 = vunpack.c.l.b16 %v236
        %v350 = vunpack.c.h.b16 %v236
        %v351 = vunpack.c.l.b16 %v237
        %v352 = vunpack.c.h.b16 %v237
        %v353 = vunpack.c.l.b16 %v238
        %v354 = vunpack.c.h.b16 %v238
        %v355 = vunpack.c.l.b16 %v239
        %v356 = vunpack.c.h.b16 %v239
        %v357 = vunpack.c.l.b16 %v240
        %v358 = vunpack.c.h.b16 %v240
        %v359 = vunpack.c.l.b16 %v241
        %v360 = vunpack.c.h.b16 %v241
        %v361 = vunpack.c.l.b16 %v242
        %v362 = vunpack.c.h.b16 %v242
        %v363 = vunpack.c.l.b16 %v243
        %v364 = vunpack.c.h.b16 %v243
        %v365 = vunpack.c.l.b16 %v244
        %v366 = vunpack.c.h.b16 %v244
        %v367 = vunpack.c.l.b16 %v245
        %v368 = vunpack.c.h.b16 %v245
        %v369 = vunpack.c.l.b16 %v246
        %v370 = vunpack.c.h.b16 %v246
        %v371 = vunpack.c.l.b16 %v247
        %v372 = vunpack.c.h.b16 %v247
        %v373 = vunpack.c.l.b16 %v248
        %v374 = vunpack.c.h.b16 %v248
        %v375 = vunpack.c.l.b16 %v249
        %v376 = vunpack.c.h.b16 %v249
        %v377 = vunpack.c.l.b16 %v250
        %v378 = vunpack.c.h.b16 %v250
        %v379 = vpack.c.b16 %v317, %v315
        %v380 = vpack.c.b16 %v318, %v316
        %v381 = vpack.c.b16 %v321, %v319
        %v382 = vpack.c.b16 %v322, %v320
        %v383 = vpack.c.b16 %v325, %v323
        %v384 = vpack.c.b16 %v326, %v324
        %v385 = vpack.c.b16 %v329, %v327
        %v386 = vpack.c.b16 %v330, %v328
        %v387 = vpack.c.b16 %v333, %v331
        %v388 = vpack.c.b16 %v334, %v332
        %v389 = vpack.c.b16 %v337, %v335
        %v390 = vpack.c.b16 %v338, %v336
        %v391 = vpack.c.b16 %v341, %v339
        %v392 = vpack.c.b16 %v342, %v340
        %v393 = vpack.c.b16 %v345, %v343
        %v394 = vpack.c.b16 %v346, %v344
        %v395 = vpack.c.b16 %v349, %v347
        %v396 = vpack.c.b16 %v350, %v348
        %v397 = vpack.c.b16 %v353, %v351
        %v398 = vpack.c.b16 %v354, %v352
        %v399 = vpack.c.b16 %v357, %v355
        %v400 = vpack.c.b16 %v358, %v356
        %v401 = vpack.c.b16 %v361, %v359
        %v402 = vpack.c.b16 %v362, %v360
        %v403 = vpack.c.b16 %v365, %v363
        %v404 = vpack.c.b16 %v366, %v364
        %v405 = vpack.c.b16 %v369, %v367
        %v406 = vpack.c.b16 %v370, %v368
        %v407 = vpack.c.b16 %v373, %v371
        %v408 = vpack.c.b16 %v374, %v372
        %v409 = vpack.c.b16 %v377, %v375
        %v410 = vpack.c.b16 %v378, %v376
        %v475 = vunpack.c.l.b16 %v251
        %v476 = vunpack.c.l.b16 %v252
        %v477 = vunpack.c.l.b16 %v253
        %v478 = vunpack.c.l.b16 %v254
        %v479 = vunpack.c.l.b16 %v255
        %v480 = vunpack.c.l.b16 %v256
        %v481 = vunpack.c.l.b16 %v257
        %v482 = vunpack.c.l.b16 %v258
        %v483 = vunpack.c.l.b16 %v259
        %v484 = vunpack.c.l.b16 %v260
        %v485 = vunpack.c.l.b16 %v261
        %v486 = vunpack.c.l.b16 %v262
        %v487 = vunpack.c.l.b16 %v263
        %v488 = vunpack.c.l.b16 %v264
        %v489 = vunpack.c.l.b16 %v265
        %v490 = vunpack.c.l.b16 %v266
        %v491 = vunpack.c.l.b16 %v267
        %v492 = vunpack.c.l.b16 %v268
        %v493 = vunpack.c.l.b16 %v269
        %v494 = vunpack.c.l.b16 %v270
        %v495 = vunpack.c.l.b16 %v271
        %v496 = vunpack.c.l.b16 %v272
        %v497 = vunpack.c.l.b16 %v273
        %v498 = vunpack.c.l.b16 %v274
        %v499 = vunpack.c.l.b16 %v275
        %v500 = vunpack.c.l.b16 %v276
        %v501 = vunpack.c.l.b16 %v277
        %v502 = vunpack.c.l.b16 %v278
        %v503 = vunpack.c.l.b16 %v279
        %v504 = vunpack.c.l.b16 %v280
        %v505 = vunpack.c.l.b16 %v281
        %v506 = vunpack.c.l.b16 %v282
        %v507 = vpack.c.b16 %v476, %v475
        %v508 = vpack.c.b16 %v478, %v477
        %v509 = vpack.c.b16 %v480, %v479
        %v510 = vpack.c.b16 %v482, %v481
        %v511 = vpack.c.b16 %v484, %v483
        %v512 = vpack.c.b16 %v486, %v485
        %v513 = vpack.c.b16 %v488, %v487
        %v514 = vpack.c.b16 %v490, %v489
        %v515 = vpack.c.b16 %v492, %v491
        %v516 = vpack.c.b16 %v494, %v493
        %v517 = vpack.c.b16 %v496, %v495
        %v518 = vpack.c.b16 %v498, %v497
        %v519 = vpack.c.b16 %v500, %v499
        %v520 = vpack.c.b16 %v502, %v501
        %v521 = vpack.c.b16 %v504, %v503
        %v522 = vpack.c.b16 %v506, %v505
        %539 = vmatprep.subr.bf16.mxu0 0
        %540 = vmatpush1.bf16.msra.mxu0 %v514
        %541 = vmatprep.subr.bf16.mxu0 0
        %542 = vmatpush1.bf16.msra.mxu0 %v513
        %543 = vmatprep.subr.bf16.mxu0 0
        %544 = vmatpush1.bf16.msra.mxu0 %v512
        %545 = vmatprep.subr.bf16.mxu0 0
        %546 = vmatpush1.bf16.msra.mxu0 %v511
        %547 = vmatprep.subr.bf16.mxu0 0
        %548 = vmatpush1.bf16.msra.mxu0 %v510
        %549 = vmatprep.subr.bf16.mxu0 0
        %550 = vmatpush1.bf16.msra.mxu0 %v509
        %551 = vmatprep.subr.bf16.mxu0 0
        %552 = vmatpush1.bf16.msra.mxu0 %v508
        %553 = vmatprep.subr.bf16.mxu0 0
        %554 = vmatpush1.bf16.msra.mxu0 %v507
        %555 = vmatprep.subr.bf16.mxu0 0
        %556 = vmatpush2.bf16.msra.mxu0 %v522
        %557 = vmatprep.subr.bf16.mxu0 0
        %558 = vmatpush2.bf16.msra.mxu0 %v521
        %559 = vmatprep.subr.bf16.mxu0 0
        %560 = vmatpush2.bf16.msra.mxu0 %v520
        %561 = vmatprep.subr.bf16.mxu0 0
        %562 = vmatpush2.bf16.msra.mxu0 %v519
        %563 = vmatprep.subr.bf16.mxu0 0
        %564 = vmatpush2.bf16.msra.mxu0 %v518
        %565 = vmatprep.subr.bf16.mxu0 0
        %566 = vmatpush2.bf16.msra.mxu0 %v517
        %567 = vmatprep.subr.bf16.mxu0 0
        %568 = vmatpush2.bf16.msra.mxu0 %v516
        %569 = vmatprep.subr.bf16.mxu0 0
        %570 = vmatpush2.bf16.msra.mxu0 %v515
        %571 = vmatprep.mubr.bf16.mxu0 %v380
        %572 = vmatmul.mubr.bf16.gmra.mxu0 %v379
        %v573 = vpop.f32.mrf.mxu0
        %v574 = vadd.f32 0.0, %v573
        %v575 = vpop.f32.mrf.mxu0
        %v576 = vpop.f32.mrf.mxu0
        %v577 = vadd.f32 0.0, %v576
        %v578 = vpop.f32.mrf.mxu0
        %579 = vmatprep.mubr.bf16.mxu0 %v382
        %580 = vmatmul.mubr.bf16.gmra.mxu0 %v381
        %v581 = vpop.f32.mrf.mxu0
        %v582 = vadd.f32 0.0, %v581
        %v583 = vpop.f32.mrf.mxu0
        %v584 = vpop.f32.mrf.mxu0
        %v585 = vadd.f32 0.0, %v584
        %v586 = vpop.f32.mrf.mxu0
        %587 = vmatprep.mubr.bf16.mxu0 %v384
        %588 = vmatmul.mubr.bf16.gmra.mxu0 %v383
        %v589 = vpop.f32.mrf.mxu0
        %v590 = vadd.f32 0.0, %v589
        %v591 = vpop.f32.mrf.mxu0
        %v592 = vpop.f32.mrf.mxu0
        %v593 = vadd.f32 0.0, %v592
        %v594 = vpop.f32.mrf.mxu0
        %595 = vmatprep.mubr.bf16.mxu0 %v386
        %596 = vmatmul.mubr.bf16.gmra.mxu0 %v385
        %v597 = vpop.f32.mrf.mxu0
        %v598 = vadd.f32 0.0, %v597
        %v599 = vpop.f32.mrf.mxu0
        %v600 = vpop.f32.mrf.mxu0
        %v601 = vadd.f32 0.0, %v600
        %v602 = vpop.f32.mrf.mxu0
        %603 = vmatprep.mubr.bf16.mxu0 %v388
        %604 = vmatmul.mubr.bf16.gmra.mxu0 %v387
        %v605 = vpop.f32.mrf.mxu0
        %v606 = vadd.f32 0.0, %v605
        %v607 = vpop.f32.mrf.mxu0
        %v608 = vpop.f32.mrf.mxu0
        %v609 = vadd.f32 0.0, %v608
        %v610 = vpop.f32.mrf.mxu0
        %611 = vmatprep.mubr.bf16.mxu0 %v390
        %612 = vmatmul.mubr.bf16.gmra.mxu0 %v389
        %v613 = vpop.f32.mrf.mxu0
        %v614 = vadd.f32 0.0, %v613
        %v615 = vpop.f32.mrf.mxu0
        %v616 = vpop.f32.mrf.mxu0
        %v617 = vadd.f32 0.0, %v616
        %v618 = vpop.f32.mrf.mxu0
        %619 = vmatprep.mubr.bf16.mxu0 %v392
        %620 = vmatmul.mubr.bf16.gmra.mxu0 %v391
        %v621 = vpop.f32.mrf.mxu0
        %v622 = vadd.f32 0.0, %v621
        %v623 = vpop.f32.mrf.mxu0
        %v624 = vpop.f32.mrf.mxu0
        %v625 = vadd.f32 0.0, %v624
        %v626 = vpop.f32.mrf.mxu0
        %627 = vmatprep.mubr.bf16.mxu0 %v394
        %628 = vmatmul.mubr.bf16.gmra.mxu0 %v393
        %v629 = vpop.f32.mrf.mxu0
        %v630 = vadd.f32 0.0, %v629
        %v631 = vpop.f32.mrf.mxu0
        %v632 = vpop.f32.mrf.mxu0
        %v633 = vadd.f32 0.0, %v632
        %v634 = vpop.f32.mrf.mxu0
        %635 = vmatprep.mubr.bf16.mxu0 %v396
        %636 = vmatmul.mubr.bf16.gmra.mxu0 %v395
        %v637 = vpop.f32.mrf.mxu0
        %v638 = vadd.f32 0.0, %v637
        %v639 = vpop.f32.mrf.mxu0
        %v640 = vpop.f32.mrf.mxu0
        %v641 = vadd.f32 0.0, %v640
        %v642 = vpop.f32.mrf.mxu0
        %643 = vmatprep.mubr.bf16.mxu0 %v398
        %644 = vmatmul.mubr.bf16.gmra.mxu0 %v397
        %v645 = vpop.f32.mrf.mxu0
        %v646 = vadd.f32 0.0, %v645
        %v647 = vpop.f32.mrf.mxu0
        %v648 = vpop.f32.mrf.mxu0
        %v649 = vadd.f32 0.0, %v648
        %v650 = vpop.f32.mrf.mxu0
        %651 = vmatprep.mubr.bf16.mxu0 %v400
        %652 = vmatmul.mubr.bf16.gmra.mxu0 %v399
        %v653 = vpop.f32.mrf.mxu0
        %v654 = vadd.f32 0.0, %v653
        %v655 = vpop.f32.mrf.mxu0
        %v656 = vpop.f32.mrf.mxu0
        %v657 = vadd.f32 0.0, %v656
        %v658 = vpop.f32.mrf.mxu0
        %659 = vmatprep.mubr.bf16.mxu0 %v402
        %660 = vmatmul.mubr.bf16.gmra.mxu0 %v401
        %v661 = vpop.f32.mrf.mxu0
        %v662 = vadd.f32 0.0, %v661
        %v663 = vpop.f32.mrf.mxu0
        %v664 = vpop.f32.mrf.mxu0
        %v665 = vadd.f32 0.0, %v664
        %v666 = vpop.f32.mrf.mxu0
        %667 = vmatprep.mubr.bf16.mxu0 %v404
        %668 = vmatmul.mubr.bf16.gmra.mxu0 %v403
        %v669 = vpop.f32.mrf.mxu0
        %v670 = vadd.f32 0.0, %v669
        %v671 = vpop.f32.mrf.mxu0
        %v672 = vpop.f32.mrf.mxu0
        %v673 = vadd.f32 0.0, %v672
        %v674 = vpop.f32.mrf.mxu0
        %675 = vmatprep.mubr.bf16.mxu0 %v406
        %676 = vmatmul.mubr.bf16.gmra.mxu0 %v405
        %v677 = vpop.f32.mrf.mxu0
        %v678 = vadd.f32 0.0, %v677
        %v679 = vpop.f32.mrf.mxu0
        %v680 = vpop.f32.mrf.mxu0
        %v681 = vadd.f32 0.0, %v680
        %v682 = vpop.f32.mrf.mxu0
        %683 = vmatprep.mubr.bf16.mxu0 %v408
        %684 = vmatmul.mubr.bf16.gmra.mxu0 %v407
        %v685 = vpop.f32.mrf.mxu0
        %v686 = vadd.f32 0.0, %v685
        %v687 = vpop.f32.mrf.mxu0
        %v688 = vpop.f32.mrf.mxu0
        %v689 = vadd.f32 0.0, %v688
        %v690 = vpop.f32.mrf.mxu0
        %691 = vmatprep.mubr.bf16.mxu0 %v410
        %692 = vmatmul.mubr.bf16.gmra.mxu0 %v409
        %v693 = vpop.f32.mrf.mxu0
        %v694 = vadd.f32 0.0, %v693
        %v695 = vpop.f32.mrf.mxu0
        %v696 = vpop.f32.mrf.mxu0
        %v697 = vadd.f32 0.0, %v696
        %v698 = vpop.f32.mrf.mxu0
        %699 = vdwg.mxu0
        %v700 = vadd.f32 %v574, %v577
        %v701 = vadd.f32 %v700, %v582
        %v702 = vadd.f32 %v701, %v585
        %v703 = vadd.f32 %v702, %v590
        %v704 = vadd.f32 %v703, %v593
        %v705 = vadd.f32 %v704, %v598
        %v706 = vadd.f32 %v705, %v601
        %v707 = vadd.f32 %v706, %v606
        %v708 = vadd.f32 %v707, %v609
        %v709 = vadd.f32 %v708, %v614
        %v710 = vadd.f32 %v709, %v617
        %v711 = vadd.f32 %v710, %v622
        %v712 = vadd.f32 %v711, %v625
        %v713 = vadd.f32 %v712, %v630
        %v714 = vadd.f32 %v713, %v633
        %v715 = vadd.f32 %v714, %v638
        %v716 = vadd.f32 %v715, %v641
        %v717 = vadd.f32 %v716, %v646
        %v718 = vadd.f32 %v717, %v649
        %v719 = vadd.f32 %v718, %v654
        %v720 = vadd.f32 %v719, %v657
        %v721 = vadd.f32 %v720, %v662
        %v722 = vadd.f32 %v721, %v665
        %v723 = vadd.f32 %v722, %v670
        %v724 = vadd.f32 %v723, %v673
        %v725 = vadd.f32 %v724, %v678
        %v726 = vadd.f32 %v725, %v681
        %v727 = vadd.f32 %v726, %v686
        %v728 = vadd.f32 %v727, %v689
        %v729 = vadd.f32 %v728, %v694
        %v730 = vadd.f32 %v729, %v697
        %v731 = vrot.slane %v730, 4
        %v732 = vadd.f32 %v730, %v731
        %v733 = vrot.slane %v732, 2
        %v734 = vadd.f32 %v732, %v733
        %v735 = vrot.slane %v734, 1
        %v736 = vadd.f32 %v734, %v735
        %737 = vst [vmem:[%s215] sm:$0x1] %v736
        %v738 = vmul.f32 %v574, %v574
        %v739 = vmul.f32 %v577, %v577
        %v740 = vmul.f32 %v582, %v582
        %v741 = vmul.f32 %v585, %v585
        %v742 = vmul.f32 %v590, %v590
        %v743 = vmul.f32 %v593, %v593
        %v744 = vmul.f32 %v598, %v598
        %v745 = vmul.f32 %v601, %v601
        %v746 = vmul.f32 %v606, %v606
        %v747 = vmul.f32 %v609, %v609
        %v748 = vmul.f32 %v614, %v614
        %v749 = vmul.f32 %v617, %v617
        %v750 = vmul.f32 %v622, %v622
        %v751 = vmul.f32 %v625, %v625
        %v752 = vmul.f32 %v630, %v630
        %v753 = vmul.f32 %v633, %v633
        %v754 = vmul.f32 %v638, %v638
        %v755 = vmul.f32 %v641, %v641
        %v756 = vmul.f32 %v646, %v646
        %v757 = vmul.f32 %v649, %v649
        %v758 = vmul.f32 %v654, %v654
        %v759 = vmul.f32 %v657, %v657
        %v760 = vmul.f32 %v662, %v662
        %v761 = vmul.f32 %v665, %v665
        %v762 = vmul.f32 %v670, %v670
        %v763 = vmul.f32 %v673, %v673
        %v764 = vmul.f32 %v678, %v678
        %v765 = vmul.f32 %v681, %v681
        %v766 = vmul.f32 %v686, %v686
        %v767 = vmul.f32 %v689, %v689
        %v768 = vmul.f32 %v694, %v694
        %v769 = vmul.f32 %v697, %v697
        %v770 = vadd.f32 %v738, %v739
        %v771 = vadd.f32 %v770, %v740
        %v772 = vadd.f32 %v771, %v741
        %v773 = vadd.f32 %v772, %v742
        %v774 = vadd.f32 %v773, %v743
        %v775 = vadd.f32 %v774, %v744
        %v776 = vadd.f32 %v775, %v745
        %v777 = vadd.f32 %v776, %v746
        %v778 = vadd.f32 %v777, %v747
        %v779 = vadd.f32 %v778, %v748
        %v780 = vadd.f32 %v779, %v749
        %v781 = vadd.f32 %v780, %v750
        %v782 = vadd.f32 %v781, %v751
        %v783 = vadd.f32 %v782, %v752
        %v784 = vadd.f32 %v783, %v753
        %v785 = vadd.f32 %v784, %v754
        %v786 = vadd.f32 %v785, %v755
        %v787 = vadd.f32 %v786, %v756
        %v788 = vadd.f32 %v787, %v757
        %v789 = vadd.f32 %v788, %v758
        %v790 = vadd.f32 %v789, %v759
        %v791 = vadd.f32 %v790, %v760
        %v792 = vadd.f32 %v791, %v761
        %v793 = vadd.f32 %v792, %v762
        %v794 = vadd.f32 %v793, %v763
        %v795 = vadd.f32 %v794, %v764
        %v796 = vadd.f32 %v795, %v765
        %v797 = vadd.f32 %v796, %v766
        %v798 = vadd.f32 %v797, %v767
        %v799 = vadd.f32 %v798, %v768
        %v800 = vadd.f32 %v799, %v769
        %v801 = vrot.slane %v800, 4
        %v802 = vadd.f32 %v800, %v801
        %v803 = vrot.slane %v802, 2
        %v804 = vadd.f32 %v802, %v803
        %v805 = vrot.slane %v804, 1
        %v806 = vadd.f32 %v804, %v805
        %807 = vst [vmem:[%s215 + $0x1] sm:$0x1] %v806
        %v808 = vpack.c.bf16 %v577, %v574
        %v809 = vpack.c.bf16 %v585, %v582
        %v810 = vpack.c.bf16 %v593, %v590
        %v811 = vpack.c.bf16 %v601, %v598
        %v812 = vpack.c.bf16 %v609, %v606
        %v813 = vpack.c.bf16 %v617, %v614
        %v814 = vpack.c.bf16 %v625, %v622
        %v815 = vpack.c.bf16 %v633, %v630
        %v816 = vpack.c.bf16 %v641, %v638
        %v817 = vpack.c.bf16 %v649, %v646
        %v818 = vpack.c.bf16 %v657, %v654
        %v819 = vpack.c.bf16 %v665, %v662
        %v820 = vpack.c.bf16 %v673, %v670
        %v821 = vpack.c.bf16 %v681, %v678
        %v822 = vpack.c.bf16 %v689, %v686
        %v823 = vpack.c.bf16 %v697, %v694
        %v840 = vunpack.c.l.b16 %v808
        %v841 = vunpack.c.h.b16 %v808
        %v842 = vunpack.c.l.b16 %v809
        %v843 = vunpack.c.h.b16 %v809
        %v844 = vunpack.c.l.b16 %v810
        %v845 = vunpack.c.h.b16 %v810
        %v846 = vunpack.c.l.b16 %v811
        %v847 = vunpack.c.h.b16 %v811
        %v848 = vunpack.c.l.b16 %v812
        %v849 = vunpack.c.h.b16 %v812
        %v850 = vunpack.c.l.b16 %v813
        %v851 = vunpack.c.h.b16 %v813
        %v852 = vunpack.c.l.b16 %v814
        %v853 = vunpack.c.h.b16 %v814
        %v854 = vunpack.c.l.b16 %v815
        %v855 = vunpack.c.h.b16 %v815
        %v856 = vunpack.c.l.b16 %v816
        %v857 = vunpack.c.h.b16 %v816
        %v858 = vunpack.c.l.b16 %v817
        %v859 = vunpack.c.h.b16 %v817
        %v860 = vunpack.c.l.b16 %v818
        %v861 = vunpack.c.h.b16 %v818
        %v862 = vunpack.c.l.b16 %v819
        %v863 = vunpack.c.h.b16 %v819
        %v864 = vunpack.c.l.b16 %v820
        %v865 = vunpack.c.h.b16 %v820
        %v866 = vunpack.c.l.b16 %v821
        %v867 = vunpack.c.h.b16 %v821
        %v868 = vunpack.c.l.b16 %v822
        %v869 = vunpack.c.h.b16 %v822
        %v870 = vunpack.c.l.b16 %v823
        %v871 = vunpack.c.h.b16 %v823
        %v872 = vpack.c.b16 %v840, %v840
        %v873 = vpack.c.b16 %v841, %v841
        %v874 = vpack.c.b16 %v842, %v842
        %v875 = vpack.c.b16 %v843, %v843
        %v876 = vpack.c.b16 %v844, %v844
        %v877 = vpack.c.b16 %v845, %v845
        %v878 = vpack.c.b16 %v846, %v846
        %v879 = vpack.c.b16 %v847, %v847
        %v880 = vpack.c.b16 %v848, %v848
        %v881 = vpack.c.b16 %v849, %v849
        %v882 = vpack.c.b16 %v850, %v850
        %v883 = vpack.c.b16 %v851, %v851
        %v884 = vpack.c.b16 %v852, %v852
        %v885 = vpack.c.b16 %v853, %v853
        %v886 = vpack.c.b16 %v854, %v854
        %v887 = vpack.c.b16 %v855, %v855
        %v888 = vpack.c.b16 %v856, %v856
        %v889 = vpack.c.b16 %v857, %v857
        %v890 = vpack.c.b16 %v858, %v858
        %v891 = vpack.c.b16 %v859, %v859
        %v892 = vpack.c.b16 %v860, %v860
        %v893 = vpack.c.b16 %v861, %v861
        %v894 = vpack.c.b16 %v862, %v862
        %v895 = vpack.c.b16 %v863, %v863
        %v896 = vpack.c.b16 %v864, %v864
        %v897 = vpack.c.b16 %v865, %v865
        %v898 = vpack.c.b16 %v866, %v866
        %v899 = vpack.c.b16 %v867, %v867
        %v900 = vpack.c.b16 %v868, %v868
        %v901 = vpack.c.b16 %v869, %v869
        %v902 = vpack.c.b16 %v870, %v870
        %v903 = vpack.c.b16 %v871, %v871
        %936 = vst [vmem:[%s208] sm:$0xf] %v872
        %937 = vst [vmem:[%s208 + $0x4] sm:$0xf] %v873
        %938 = vst [vmem:[%s208 + $0x8] sm:$0xf] %v874
        %939 = vst [vmem:[%s208 + $0xc] sm:$0xf] %v875
        %940 = vst [vmem:[%s208 + $0x10] sm:$0xf] %v876
        %941 = vst [vmem:[%s208 + $0x14] sm:$0xf] %v877
        %942 = vst [vmem:[%s208 + $0x18] sm:$0xf] %v878
        %943 = vst [vmem:[%s208 + $0x1c] sm:$0xf] %v879
        %944 = vst [vmem:[%s208 + $0x20] sm:$0xf] %v880
        %945 = vst [vmem:[%s208 + $0x24] sm:$0xf] %v881
        %946 = vst [vmem:[%s208 + $0x28] sm:$0xf] %v882
        %947 = vst [vmem:[%s208 + $0x2c] sm:$0xf] %v883
        %948 = vst [vmem:[%s208 + $0x30] sm:$0xf] %v884
        %949 = vst [vmem:[%s208 + $0x34] sm:$0xf] %v885
        %950 = vst [vmem:[%s208 + $0x38] sm:$0xf] %v886
        %951 = vst [vmem:[%s208 + $0x3c] sm:$0xf] %v887
        %952 = vst [vmem:[%s208 + $0x40] sm:$0xf] %v888
        %953 = vst [vmem:[%s208 + $0x44] sm:$0xf] %v889
        %954 = vst [vmem:[%s208 + $0x48] sm:$0xf] %v890
        %955 = vst [vmem:[%s208 + $0x4c] sm:$0xf] %v891
        %956 = vst [vmem:[%s208 + $0x50] sm:$0xf] %v892
        %957 = vst [vmem:[%s208 + $0x54] sm:$0xf] %v893
        %958 = vst [vmem:[%s208 + $0x58] sm:$0xf] %v894
        %959 = vst [vmem:[%s208 + $0x5c] sm:$0xf] %v895
        %960 = vst [vmem:[%s208 + $0x60] sm:$0xf] %v896
        %961 = vst [vmem:[%s208 + $0x64] sm:$0xf] %v897
        %962 = vst [vmem:[%s208 + $0x68] sm:$0xf] %v898
        %963 = vst [vmem:[%s208 + $0x6c] sm:$0xf] %v899
        %964 = vst [vmem:[%s208 + $0x70] sm:$0xf] %v900
        %965 = vst [vmem:[%s208 + $0x74] sm:$0xf] %v901
        %966 = vst [vmem:[%s208 + $0x78] sm:$0xf] %v902
        %967 = vst [vmem:[%s208 + $0x7c] sm:$0xf] %v903
        %s968 = sand.u32 %s80, 1
        %s969 = scalar_lea.sflag [#allocation4], %s968
        %s970 = sand.u32 %s80, 1
        %s971 = smul.addr %s970, 128
        %s972 = scalar_lea.vmem [#allocation7], %s971
        %s973 = sand.u32 %s106, 1
        %s974 = scalar_lea.sflag [#allocation9], %s973
        %s975 = sand.u32 %s106, 1
        %s976 = smul.addr %s975, 8
        %s977 = scalar_lea.vmem [#allocation8], %s976
        // Predicated region
        $region37: #{matmul_resident.1} parent=27 // pred_check
          %p978 = pneg %p90
        $region38: #{matmul_resident.1} parent=27 // pred_check_branch
          %980 = sbr.rel (%p978) target = $region40
        $region39: #{matmul_resident.1} parent=27 // pred_region
          %s981 = smul.u32 32, %s25
          %s983 = ssub.s32 2048, 2048
          %984 = vsyncadd %s969, %s983
          %s985 = smul.addr %s981, 64
          %s986 = scalar_lea.hbm %s2, %s985
          %s987 = sshll.u32 %s972, 4
          %s988 = int_to_ptr.vmem [resolvable:$true] %s987
          %993 = dma.vmem_to_hbm [thread:$0]  %s988, 2048, %s986, %s969, 64, 64, 4
        $region40: #{matmul_resident.1} parent=27 // pred_fallthru
          _
        // Predicated region
        $region41: #{matmul_resident.1} parent=27 // pred_check
          %p994 = pneg %p116
        $region42: #{matmul_resident.1} parent=27 // pred_check_branch
          %996 = sbr.rel (%p994) target = $region44
        $region43: #{matmul_resident.1} parent=27 // pred_region
          %s998 = ssub.s32 128, 128
          %999 = vsyncadd %s974, %s998
          %s1000 = smul.addr %s25, 128
          %s1001 = scalar_lea.hbm %s3, %s1000
          %s1003 = sshll.u32 %s977, 4
          %s1004 = int_to_ptr.vmem [resolvable:$true] %s1003
          %1006 = dma.vmem_to_hbm [thread:$0]  %s1004, 128, %s1001, %s974
        $region44: #{matmul_resident.1} parent=27 // pred_fallthru
          _
      $region28: #{matmul_resident.1} parent=5 // pred_fallthru
        _
      %p1007 = scmp.le.s32.totalorder 2, %s20
      // Predicated region
      $region45: #{matmul_resident.1} parent=5 // pred_check
        %p1008 = pneg %p1007
      $region46: #{matmul_resident.1} parent=5 // pred_check_branch
        %1010 = sbr.rel (%p1008) target = $region48
      $region47: #{matmul_resident.1} parent=5 // pred_region
        %s1011 = ssub.s32 %s20, 2
        // Predicated region
        $region49: #{matmul_resident.1} parent=47 // pred_check
          %p1012 = pneg %p96
        $region50: #{matmul_resident.1} parent=47 // pred_check_branch
          %1014 = sbr.rel (%p1012) target = $region52
        $region51: #{matmul_resident.1} parent=47 // pred_region
          %s1015 = sand.u32 %s81, 1
          %s1016 = scalar_lea.sflag [#allocation4], %s1015
          %s1017 = sand.u32 %s81, 1
          %s1018 = smul.addr %s1017, 128
          %s1019 = scalar_lea.vmem [#allocation7], %s1018
          %1020 = dma.done %s1016, 2048
        $region52: #{matmul_resident.1} parent=47 // pred_fallthru
          _
        // Predicated region
        $region53: #{matmul_resident.1} parent=47 // pred_check
          %p1021 = pneg %p122
        $region54: #{matmul_resident.1} parent=47 // pred_check_branch
          %1023 = sbr.rel (%p1021) target = $region56
        $region55: #{matmul_resident.1} parent=47 // pred_region
          %s1024 = sand.u32 %s107, 1
          %s1025 = scalar_lea.sflag [#allocation9], %s1024
          %s1026 = sand.u32 %s107, 1
          %s1027 = smul.addr %s1026, 8
          %s1028 = scalar_lea.vmem [#allocation8], %s1027
          %1029 = dma.done %s1025, 128
        $region56: #{matmul_resident.1} parent=47 // pred_fallthru
          _
      $region48: #{matmul_resident.1} parent=5 // pred_fallthru
        _
    $region6: #{matmul_resident.1} parent=1 // loop_footer
      %s24 = sadd.s32 1, %s20
    $region7: #{matmul_resident.1} parent=1 // loop_footer_branch
      %19 = sbr.rel target = $region3
    $region8: #{matmul_resident.1} parent=1 // loop_exit
      _
    %1030 = vsyncpa [#allocation3], 1
    %s1031 = scalar_lea.sflag [#allocation3], 1
    %1032 = vsyncpa %s1031, 1
    %1033 = vsyncpa [#allocation6], 1
    %1034 = vsyncpa [#allocation4], 1
    %s1035 = scalar_lea.sflag [#allocation4], 1
    %1036 = vsyncpa %s1035, 1
    %1037 = vsyncpa [#allocation9], 1
    %s1038 = scalar_lea.sflag [#allocation9], 1
    %1039 = vsyncpa %s1038, 1

</llo_original>
